<compile_context>
chip_gen: v5e
topology: v5e:2x2
jax: 0.10.0
libtpu: 0.0.40
codegen_flags: <defaults>
</compile_context>

<pallas_src>
import math
from functools import partial

import jax
import jax.numpy as jnp
from jax import lax
from jax.experimental import pallas as pl
from jax.experimental.pallas import tpu as pltpu


def _round_up(x, m):
    return ((x + m - 1) // m) * m


def _pooler_kernel(x_ref, w_ref, b_ref, o_ref):
    # x_ref: (tile_m, E) bf16/f32 activations (rows = flattened (b,s,c))
    # w_ref: (A, E)   weight, PyTorch Linear layout, VMEM resident
    # b_ref: (A, 1)   f32 bias, VMEM resident
    # o_ref: (A, tile_m) lane-dense output tile
    y = lax.dot_general(
        w_ref[...], x_ref[...],
        dimension_numbers=(((1,), (1,)), ((), ())),   # contract E on both
        preferred_element_type=jnp.float32,            # f32 MXU accumulation
    )                                                  # (A, tile_m)
    y = y + b_ref[...]                                 # (A, 1) broadcasts over lanes
    # tanh-approximation GELU, exactly as in the PyTorch reference (f32 math).
    c = math.sqrt(2.0 / math.pi)
    cdf = 0.5 * (1.0 + jnp.tanh(c * (y + 0.044715 * (y * y * y))))
    o_ref[...] = (y * cdf).astype(o_ref.dtype)


def adapter_pooler_matmul(x2d, w, b, *, tile_m=2048, out_dtype=jnp.float32):
    """x2d: (M, E), w: (A, E), b: (A, 1) -> (A, M_pad) with tanh-GELU applied.

    Output is transposed (A on sublanes, M on lanes) so stores are lane-dense;
    caller slices off padding and fixes up the layout on the small result.
    """
    M, E = x2d.shape
    A = w.shape[0]

    # Pick a large lane-dense tile (multiple of 128), capped by the work size.
    tile_cap = max(128, _round_up(min(tile_m, M), 128))
    steps = pl.cdiv(M, tile_cap)
    # v7x megacore: keep at least 2 "parallel" grid steps when there is work.
    if steps == 1 and _round_up(M, 128) >= 256:
        steps = 2
    tile_m = _round_up(pl.cdiv(M, steps), 128)
    m_pad = steps * tile_m

    if m_pad != M:
        # Pad instead of asserting divisibility; padded rows are sliced away
        # by the caller (no cross-row reduction, so garbage rows are harmless).
        x2d = jnp.pad(x2d, ((0, m_pad - M), (0, 0)))

    return pl.pallas_call(
        _pooler_kernel,
        out_shape=jax.ShapeDtypeStruct((A, m_pad), out_dtype),
        grid_spec=pltpu.PrefetchScalarGridSpec(
            num_scalar_prefetch=0,
            grid=(steps,),
            in_specs=[
                pl.BlockSpec((tile_m, E), lambda i: (i, 0)),   # activation stream
                pl.BlockSpec((A, E), lambda i: (0, 0)),        # weight: VMEM resident
                pl.BlockSpec((A, 1), lambda i: (0, 0)),        # bias: VMEM resident
            ],
            out_specs=pl.BlockSpec((A, tile_m), lambda i: (0, i)),
        ),
        compiler_params=pltpu.CompilerParams(
            dimension_semantics=("parallel",),
        ),
    )(x2d, w, b)


def adapter_pooler_forward(inputs, weight, bias, adapter_dim, *,
                           compute_dtype=jnp.bfloat16, tile_m=2048):
    """Full AdapterPooler.forward.

    inputs: (B, S, E, C); weight: (A, E) (PyTorch Linear layout); bias: (A,).
    Returns (B, S, A, C).
    """
    B, S, E, C = inputs.shape
    A = adapter_dim
    BS = B * S
    M = BS * C

    # TimeDistributed flatten: (B,S,E,C) -> (B*S*C, E).  Single fused XLA
    # transpose; the bf16 downcast of the activation stream is folded into it.
    x2d = jnp.transpose(inputs.reshape(BS, E, C), (0, 2, 1)).reshape(M, E)
    x2d = x2d.astype(compute_dtype)
    w = weight.astype(compute_dtype)                 # (A, E)
    b = bias.reshape(A, 1).astype(jnp.float32)       # (A, 1)

    y_t = adapter_pooler_matmul(x2d, w, b, tile_m=tile_m, out_dtype=inputs.dtype)
    y_t = y_t[:, :M]                                  # drop tile padding -> (A, M)

    # Output-side fixup on the small (A, M) result only.
    y = jnp.transpose(y_t.reshape(A, BS, C), (1, 0, 2))   # (B*S, A, C)
    return y.reshape(B, S, A, C)


if __name__ == "__main__":
    # Small shapes consistent with the module's (B, seq, embedding, encoder) layout.
    B, S, E, C = 2, 8, 32, 4          # batch, sequence, input_dim, encoder_dim
    A = 16                            # adapter_dim
    init_scale = 0.001

    key = jax.random.PRNGKey(0)
    k_x, k_w, k_b = jax.random.split(key, 3)

    inputs = jax.random.normal(k_x, (B, S, E, C), dtype=jnp.float32)
    # Deterministic Linear(input_dim=E, adapter_dim=A) params in PyTorch layout.
    weight = jax.random.normal(k_w, (A, E), dtype=jnp.float32) * init_scale
    bias = jax.random.normal(k_b, (A,), dtype=jnp.float32) * init_scale

    fwd = jax.jit(lambda x, w, b: adapter_pooler_forward(x, w, b, A))
    out = jax.block_until_ready(fwd(inputs, weight, bias))

    # Pure-JAX reference of the full forward semantics (matching the kernel's
    # bf16 activation/weight streams so the comparison is tight).
    def ref_forward(x, w, b):
        xr = jnp.transpose(x.reshape(B * S, E, C), (0, 2, 1)).reshape(-1, E)
        xr = xr.astype(jnp.bfloat16).astype(jnp.float32)
        wf = w.astype(jnp.bfloat16).astype(jnp.float32)
        y = xr @ wf.T + b[None, :]
        cdf = 0.5 * (1.0 + jnp.tanh(math.sqrt(2.0 / math.pi)
                                    * (y + 0.044715 * y ** 3)))
        y = y * cdf
        y = jnp.transpose(y.reshape(B * S, C, A), (0, 2, 1))
        return y.reshape(B, S, A, C)

    ref = ref_forward(inputs, weight, bias)
    assert out.shape == (B, S, A, C)
    err = float(jnp.max(jnp.abs(out - ref)))
    assert jnp.allclose(out, ref, atol=1e-4, rtol=1e-2), f"max abs err {err}"

    print("KERNEL_OK")
</pallas_src>

<mosaic_0001>
module attributes {stable_mosaic.version = 11 : i64} {
  func.func @_pooler_kernel(%arg0: i32, %arg1: memref<128x32xbf16, #tpu.memory_space<vmem>>, %arg2: memref<16x32xbf16, #tpu.memory_space<vmem>>, %arg3: memref<16x1xf32, #tpu.memory_space<vmem>>, %arg4: memref<16x128xf32, #tpu.memory_space<vmem>>) attributes {dimension_semantics = [#tpu.dimension_semantics<parallel>], iteration_bounds = array<i64: 1>, scalar_prefetch = 0 : i64, scratch_operands = 0 : i64, tpu.core_type = #tpu.core_type<tc>, window_params = [{transform_indices = @transform_0, window_bounds = array<i64: 128, 32>}, {pipeline_mode = #tpu.pipeline_mode<synchronous>, transform_indices = @transform_1, window_bounds = array<i64: 16, 32>}, {pipeline_mode = #tpu.pipeline_mode<synchronous>, transform_indices = @transform_2, window_bounds = array<i64: 16, 1>}, {transform_indices = @transform_3, window_bounds = array<i64: 16, 128>}]} {
    %c0 = arith.constant 0 : index
    %c0_0 = arith.constant 0 : index
    %0 = vector.load %arg2[%c0, %c0_0] : memref<16x32xbf16, #tpu.memory_space<vmem>>, vector<16x32xbf16>
    %c0_1 = arith.constant 0 : index
    %c0_2 = arith.constant 0 : index
    %1 = vector.load %arg1[%c0_1, %c0_2] : memref<128x32xbf16, #tpu.memory_space<vmem>>, vector<128x32xbf16>
    %cst = arith.constant dense<0.000000e+00> : vector<16x128xf32>
    %2 = tpu.matmul %0, %1, %cst {dimension_numbers = #tpu.dot_dimension_numbers<[1], [1], [0], [0], [0, 0, 1, 0], [], []>} : vector<16x32xbf16>, vector<128x32xbf16>, vector<16x128xf32> -> vector<16x128xf32>
    %c0_3 = arith.constant 0 : index
    %c0_4 = arith.constant 0 : index
    %3 = vector.load %arg3[%c0_3, %c0_4] : memref<16x1xf32, #tpu.memory_space<vmem>>, vector<16x1xf32>
    %4 = vector.broadcast %3 : vector<16x1xf32> to vector<16x128xf32>
    %5 = arith.addf %2, %4 : vector<16x128xf32>
    %6 = arith.mulf %5, %5 : vector<16x128xf32>
    %7 = arith.mulf %6, %5 : vector<16x128xf32>
    %cst_5 = arith.constant 4.471500e-02 : f32
    %8 = vector.broadcast %cst_5 : f32 to vector<16x128xf32>
    %9 = arith.mulf %8, %7 : vector<16x128xf32>
    %10 = arith.addf %5, %9 : vector<16x128xf32>
    %cst_6 = arith.constant 0.797884583 : f32
    %11 = vector.broadcast %cst_6 : f32 to vector<16x128xf32>
    %12 = arith.mulf %11, %10 : vector<16x128xf32>
    %13 = math.tanh %12 : vector<16x128xf32>
    %cst_7 = arith.constant 1.000000e+00 : f32
    %14 = vector.broadcast %cst_7 : f32 to vector<16x128xf32>
    %15 = arith.addf %14, %13 : vector<16x128xf32>
    %cst_8 = arith.constant 5.000000e-01 : f32
    %16 = vector.broadcast %cst_8 : f32 to vector<16x128xf32>
    %17 = arith.mulf %16, %15 : vector<16x128xf32>
    %18 = arith.mulf %5, %17 : vector<16x128xf32>
    %c0_9 = arith.constant 0 : index
    %c0_10 = arith.constant 0 : index
    %19 = vector.load %arg4[%c0_9, %c0_10] : memref<16x128xf32, #tpu.memory_space<vmem>>, vector<16x128xf32>
    tpu.vector_store %arg4[%c0_9, %c0_10], %18 {strides = array<i32>} : memref<16x128xf32, #tpu.memory_space<vmem>>, vector<16x128xf32>,
    return
  }
  func.func @transform_0(%arg0: i32) -> (i32, i32) {
    %c0_i32 = arith.constant 0 : i32
    %c0_i32_0 = arith.constant 0 : i32
    return %arg0, %c0_i32 : i32, i32
  }
  func.func @transform_1(%arg0: i32) -> (i32, i32) {
    %c0_i32 = arith.constant 0 : i32
    %c0_i32_0 = arith.constant 0 : i32
    %c0_i32_1 = arith.constant 0 : i32
    return %c0_i32, %c0_i32_0 : i32, i32
  }
  func.func @transform_2(%arg0: i32) -> (i32, i32) {
    %c0_i32 = arith.constant 0 : i32
    %c0_i32_0 = arith.constant 0 : i32
    %c0_i32_1 = arith.constant 0 : i32
    return %c0_i32, %c0_i32_0 : i32, i32
  }
  func.func @transform_3(%arg0: i32) -> (i32, i32) {
    %c0_i32 = arith.constant 0 : i32
    %c0_i32_0 = arith.constant 0 : i32
    return %c0_i32, %arg0 : i32, i32
  }
}

</mosaic_0001>

<llo_original>
// kernel: _lambda_.1
$region0: #{_lambda_.1}
  #allocation0 [shape = 'u32[]', space=smem, size = 0x4, offset = 0x4, fixed_abs, tag = 'smem constant byte address 0x4 - core index']
  #allocation1 [shape = 'u32[72,128]{1,0:T(1,128)}', space=vmem, size = 0x9000, scoped, tag = 'internal scratch']
  %s0 = inlined_call_operand.vmem [shape: bf16[128,32], index: 0, kind: input, shape index: {}]
  %s1 = inlined_call_operand.vmem [shape: bf16[16,32], index: 1, kind: input, shape index: {}]
  %s2 = inlined_call_operand.vmem [shape: f32[16,1], index: 2, kind: input, shape index: {}]
  %s3 = inlined_call_operand.vmem [shape: f32[16,128], index: 3, kind: output, shape index: {}]
  %s4 = sld [smem:[#allocation0]]
  $region22: #{_lambda_.1} parent=0
    _
  %s6 = ssub.s32 1, %s4
  %s7 = scalar_select 0, %s6, %s4
  // Predicated region
  $region2: #{_lambda_.1} parent=0 // pred_check
    _
  $region3: #{_lambda_.1} parent=0 // pred_check_branch
    %9 = sbr.rel (0) target = $region5
  $region4: #{_lambda_.1} parent=0 // pred_region
    _
  $region5: #{_lambda_.1} parent=0 // pred_fallthru
    _
  // Predicated region
  $region6: #{_lambda_.1} parent=0 // pred_check
    _
  $region7: #{_lambda_.1} parent=0 // pred_check_branch
    %11 = sbr.rel (0) target = $region9
  $region8: #{_lambda_.1} parent=0 // pred_region
    _
  $region9: #{_lambda_.1} parent=0 // pred_fallthru
    _
  // Predicated region
  $region10: #{_lambda_.1} parent=0 // pred_check
    _
  $region11: #{_lambda_.1} parent=0 // pred_check_branch
    %13 = sbr.rel (0) target = $region13
  $region12: #{_lambda_.1} parent=0 // pred_region
    _
  $region13: #{_lambda_.1} parent=0 // pred_fallthru
    _
  %v14 = vld [vmem:[%s1] sm:$0xf]
  %v15 = vld [vmem:[%s1 + $0x4] sm:$0xf]
  %v16 = vld [vmem:[%s0] sm:$0xf]
  %v17 = vld [vmem:[%s0 + $0x4] sm:$0xf]
  %v18 = vld [vmem:[%s0 + $0x8] sm:$0xf]
  %v19 = vld [vmem:[%s0 + $0xc] sm:$0xf]
  %v20 = vld [vmem:[%s0 + $0x10] sm:$0xf]
  %v21 = vld [vmem:[%s0 + $0x14] sm:$0xf]
  %v22 = vld [vmem:[%s0 + $0x18] sm:$0xf]
  %v23 = vld [vmem:[%s0 + $0x1c] sm:$0xf]
  %v24 = vld [vmem:[%s0 + $0x20] sm:$0xf]
  %v25 = vld [vmem:[%s0 + $0x24] sm:$0xf]
  %v26 = vld [vmem:[%s0 + $0x28] sm:$0xf]
  %v27 = vld [vmem:[%s0 + $0x2c] sm:$0xf]
  %v28 = vld [vmem:[%s0 + $0x30] sm:$0xf]
  %v29 = vld [vmem:[%s0 + $0x34] sm:$0xf]
  %v30 = vld [vmem:[%s0 + $0x38] sm:$0xf]
  %v31 = vld [vmem:[%s0 + $0x3c] sm:$0xf]
  %v32 = vld [vmem:[%s2] sm:$0xff]
  %v33 = vld [vmem:[%s2 + $0x8] sm:$0xff]
  %35 = vset.pattern.permute.xlu0 0
  %36 = vperm.xlu0 %35, %v32
  %v37 = vpop.permute.xlu0 %36
  %40 = vset.pattern.permute.xlu0 0
  %41 = vperm.xlu0 %40, %v33
  %v42 = vpop.permute.xlu0 %41
  %v46 = vunpack.c.l.b16 %v14
  %v47 = vunpack.c.l.b16 %v15
  %v48 = vpack.c.b16 %v47, %v46
  %v65 = vunpack.c.l.b16 %v16
  %v66 = vunpack.c.l.b16 %v17
  %v67 = vunpack.c.l.b16 %v18
  %v68 = vunpack.c.l.b16 %v19
  %v69 = vunpack.c.l.b16 %v20
  %v70 = vunpack.c.l.b16 %v21
  %v71 = vunpack.c.l.b16 %v22
  %v72 = vunpack.c.l.b16 %v23
  %v73 = vunpack.c.l.b16 %v24
  %v74 = vunpack.c.l.b16 %v25
  %v75 = vunpack.c.l.b16 %v26
  %v76 = vunpack.c.l.b16 %v27
  %v77 = vunpack.c.l.b16 %v28
  %v78 = vunpack.c.l.b16 %v29
  %v79 = vunpack.c.l.b16 %v30
  %v80 = vunpack.c.l.b16 %v31
  %v81 = vpack.c.b16 %v66, %v65
  %v82 = vpack.c.b16 %v68, %v67
  %v83 = vpack.c.b16 %v70, %v69
  %v84 = vpack.c.b16 %v72, %v71
  %v85 = vpack.c.b16 %v74, %v73
  %v86 = vpack.c.b16 %v76, %v75
  %v87 = vpack.c.b16 %v78, %v77
  %v88 = vpack.c.b16 %v80, %v79
  %vm89 = vcmask 261120
  %v91 = vsel %vm89, %v48, 0
  %v94 = vsel %vm89, %v81, 0
  %v97 = vsel %vm89, %v82, 0
  %v100 = vsel %vm89, %v83, 0
  %v103 = vsel %vm89, %v84, 0
  %v106 = vsel %vm89, %v85, 0
  %v109 = vsel %vm89, %v86, 0
  %v112 = vsel %vm89, %v87, 0
  %v115 = vsel %vm89, %v88, 0
  %117 = vmatpush.bf16.xpose.msra.mxu0 %v115
  %118 = vmatpush.bf16.xpose.msra.mxu0 %v112
  %119 = vmatpush.bf16.xpose.msra.mxu0 %v109
  %120 = vmatpush.bf16.xpose.msra.mxu0 %v106
  %121 = vmatpush.bf16.xpose.msra.mxu0 %v103
  %122 = vmatpush.bf16.xpose.msra.mxu0 %v100
  %123 = vmatpush.bf16.xpose.msra.mxu0 %v97
  %124 = vmatpush.bf16.xpose.msra.mxu0 %v94
  %125 = vmatmul.bf16.gmra.mxu0 %v91
  %v126 = vpop.f32.mrf.mxu0
  %v127 = vadd.f32 %v37, %v126
  %v128 = vpop.f32.mrf.mxu0
  %v129 = vadd.f32 %v42, %v128
  %130 = vdwg.mxu0
  %v131 = vmul.f32 %v127, %v127
  %v132 = vmul.f32 %v129, %v129
  %v133 = vmul.f32 %v131, %v127
  %v134 = vmul.f32 %v132, %v129
  %v135 = vmul.f32 %v133, 0.044715
  %v136 = vmul.f32 %v134, 0.044715
  %v137 = vadd.f32 %v127, %v135
  %v138 = vadd.f32 %v129, %v136
  %v139 = vmul.f32 %v137, 0.7978846
  %v140 = vmul.f32 %v138, 0.7978846
  %v141 = vtanh.pop %v139
  %v142 = vtanh.pop %v140
  %v143 = vadd.f32 %v141, 1.0
  %v144 = vadd.f32 %v142, 1.0
  %v145 = vmul.f32 %v143, 0.5
  %v146 = vmul.f32 %v144, 0.5
  %v147 = vmul.f32 %v127, %v145
  %v148 = vmul.f32 %v129, %v146
  %149 = vst [vmem:[%s3] sm:$0xff] %v147
  %150 = vst [vmem:[%s3 + $0x8] sm:$0xff] %v148
  // Predicated region
  $region14: #{_lambda_.1} parent=0 // pred_check
    _
  $region15: #{_lambda_.1} parent=0 // pred_check_branch
    %152 = sbr.rel (0) target = $region17
  $region16: #{_lambda_.1} parent=0 // pred_region
    _
  $region17: #{_lambda_.1} parent=0 // pred_fallthru
    _
  // Predicated region
  $region18: #{_lambda_.1} parent=0 // pred_check
    _
  $region19: #{_lambda_.1} parent=0 // pred_check_branch
    %154 = sbr.rel (0) target = $region21
  $region20: #{_lambda_.1} parent=0 // pred_region
    _
  $region21: #{_lambda_.1} parent=0 // pred_fallthru
    _

</llo_original>
